<compile_context>
chip_gen: v5e
topology: v5e:2x2
jax: 0.10.0
libtpu: 0.0.40
codegen_flags: <defaults>
</compile_context>

<pallas_src>
import numpy as np
import jax
import jax.numpy as jnp
from jax import lax
from jax.experimental import pallas as pl
from jax.experimental.pallas import tpu as pltpu

EPS = 1e-5


def _make_basic_block_kernel(N, H, W, C):
    NH = N * H
    WC = W * C
    inv_m = 1.0 / (N * H * W)

    def kernel(xpad_ref, w1_ref, w2_ref, g1_ref, b1_ref, g2_ref, b2_ref,
               fold_ref, out_ref, ybuf_ref):

        def conv3x3(src_ref, w_ref):
            # 3x3 stride-1 conv as 3 band matmuls: for each ky tap, one
            # (N*H, W*Cin) x (W*Cin, W*Cout) MXU matmul; the rhs is a banded
            # block-Toeplitz matrix with the kx taps and W zero-padding baked in.
            acc = None
            for ky in range(3):
                lhs = src_ref[:, ky:ky + H, :].reshape(NH, WC).astype(jnp.bfloat16)
                d = jnp.dot(lhs, w_ref[ky], preferred_element_type=jnp.float32)
                acc = d if acc is None else acc + d
            return acc                                         # (NH, WC) f32

        def bn_scale_shift(acc, g_ref, b_ref):
            # Training-mode BN stats in one pass: sublane reduce -> (1, W*C)
            # per-(w, c) sums, then one tiny matmul with the 0/1 channel-fold
            # matrix collapses the W groups.  The result repeats every C lanes,
            # i.e. it is already in the broadcast layout the elementwise pass needs.
            s1 = jnp.sum(acc, axis=0, keepdims=True)
            s2 = jnp.sum(acc * acc, axis=0, keepdims=True)
            s1 = jnp.dot(s1, fold_ref[...], preferred_element_type=jnp.float32)
            s2 = jnp.dot(s2, fold_ref[...], preferred_element_type=jnp.float32)
            mean = s1 * inv_m
            var = jnp.maximum(s2 * inv_m - mean * mean, 0.0)   # biased variance
            scale = g_ref[...] * lax.rsqrt(var + EPS)
            shift = b_ref[...] - mean * scale
            return scale, shift

        # ---- conv1 -> bn1 -> relu --------------------------------------------
        acc1 = conv3x3(xpad_ref, w1_ref)
        sc1, sh1 = bn_scale_shift(acc1, g1_ref, b1_ref)
        y1 = jnp.maximum(acc1 * sc1 + sh1, 0.0)                # (NH, WC) f32

        # Stage relu(bn1(conv1)) as conv2's H-padded input (W padding is already
        # folded into the band matrices, so only the top/bottom rows are zeroed).
        ybuf_ref[:, 0:1, :] = jnp.zeros((N, 1, WC), jnp.float32)
        ybuf_ref[:, H + 1:H + 2, :] = jnp.zeros((N, 1, WC), jnp.float32)
        ybuf_ref[:, 1:1 + H, :] = y1.reshape(N, H, WC)

        # ---- conv2 -> bn2 -> (+identity) -> relu -------------------------------
        acc2 = conv3x3(ybuf_ref, w2_ref)
        sc2, sh2 = bn_scale_shift(acc2, g2_ref, b2_ref)
        identity = xpad_ref[:, 1:1 + H, :].reshape(NH, WC)     # exact f32 x
        out_ref[...] = jnp.maximum(acc2 * sc2 + sh2 + identity, 0.0)

    return kernel


def _band_rhs(w_oihw, Wd):
    """PyTorch OIHW 3x3 weight -> (3, Wd*Cin, Wd*Cout) banded block matrices.

    R_ky[wi*Cin + ci, wo*Cout + co] = w[co, ci, ky, wi - wo + 1] when the kx tap
    is in range, else 0 (this also realizes the W zero-padding of padding=1).
    """
    Cout, Cin = w_oihw.shape[0], w_oihw.shape[1]
    taps = jnp.transpose(w_oihw, (2, 3, 1, 0))                       # (ky, kx, Cin, Cout)
    taps = jnp.concatenate(
        [taps, jnp.zeros((3, 1, Cin, Cout), taps.dtype)], axis=1)    # kx=3 -> zero block
    wi = jnp.arange(Wd)[:, None]
    wo = jnp.arange(Wd)[None, :]
    kx = wi - wo + 1                                                 # padding = 1
    sel = jnp.where((kx >= 0) & (kx <= 2), kx, 3)                    # out-of-band -> zero
    m = taps[:, sel]                                                 # (3, wi, wo, Cin, Cout)
    m = jnp.transpose(m, (0, 1, 3, 2, 4))                            # (3, wi, Cin, wo, Cout)
    return m.reshape(3, Wd * Cin, Wd * Cout)


@jax.jit
def basic_block_forward(x_nchw, w1, g1, b1, w2, g2, b2):
    N, Cin, H, W = x_nchw.shape
    Cout = w1.shape[0]
    assert Cin == Cout, "stride=1, downsample=None => identity needs Cin == Cout"
    C = Cout
    WC = W * C
    NH = N * H

    # NCHW -> (N, H+2, W*C): channels on lanes, H zero-padded (W padding lives in
    # the band matrices).  Kept f32: it doubles as the exact residual identity.
    x_nhwc = jnp.transpose(x_nchw, (0, 2, 3, 1))
    x_pad = jnp.pad(x_nhwc, ((0, 0), (1, 1), (0, 0), (0, 0)))
    x_pad = x_pad.reshape(N, H + 2, WC).astype(jnp.float32)

    # Banded block-Toeplitz conv weights (bf16 matmul operands, f32 accumulation).
    w1_k = _band_rhs(w1, W).astype(jnp.bfloat16)                     # (3, W*C, W*C)
    w2_k = _band_rhs(w2, W).astype(jnp.bfloat16)

    # gamma/beta pre-tiled to the (w, c) lane layout: lane l -> channel l % C.
    g1_k = jnp.tile(g1.astype(jnp.float32), W).reshape(1, WC)
    b1_k = jnp.tile(b1.astype(jnp.float32), W).reshape(1, WC)
    g2_k = jnp.tile(g2.astype(jnp.float32), W).reshape(1, WC)
    b2_k = jnp.tile(b2.astype(jnp.float32), W).reshape(1, WC)

    # 0/1 channel-fold matrix: fold[j, l] = 1 iff j % C == l % C.
    idx = jnp.arange(WC)
    fold = (idx[:, None] % C == idx[None, :] % C).astype(jnp.float32)

    kernel = _make_basic_block_kernel(N, H, W, C)

    def full(shape):
        zeros = (0,) * len(shape)
        return pl.BlockSpec(shape, lambda i: zeros)

    out2d = pl.pallas_call(
        kernel,
        out_shape=jax.ShapeDtypeStruct((NH, WC), jnp.float32),
        grid=(1,),
        in_specs=[
            full(x_pad.shape),
            full(w1_k.shape), full(w2_k.shape),
            full(g1_k.shape), full(b1_k.shape),
            full(g2_k.shape), full(b2_k.shape),
            full(fold.shape),
        ],
        out_specs=full((NH, WC)),
        scratch_shapes=[
            # conv2's H-padded input: holds relu(bn1(conv1)) with zero top/bottom rows
            pltpu.VMEM((N, H + 2, WC), jnp.float32),
        ],
        compiler_params=pltpu.CompilerParams(
            dimension_semantics=("arbitrary",),
            vmem_limit_bytes=32 * 1024 * 1024,
        ),
    )(x_pad, w1_k, w2_k, g1_k, b1_k, g2_k, b2_k, fold)

    # Layout plumbing back to PyTorch NCHW (pure reshape + transpose; no compute).
    return jnp.transpose(out2d.reshape(N, H, W, C), (0, 3, 1, 2))


def ref_forward(x, w1, g1, b1, w2, g2, b2):
    """Pure-JAX f32 reference matching the PyTorch BasicBlock forward (train-mode BN)."""
    dn = ('NCHW', 'OIHW', 'NCHW')

    def conv(a, w):
        return lax.conv_general_dilated(a, w, (1, 1), ((1, 1), (1, 1)),
                                        dimension_numbers=dn,
                                        precision=lax.Precision.HIGHEST)

    def bn(y, g, b):
        m = jnp.mean(y, axis=(0, 2, 3), keepdims=True)
        v = jnp.mean((y - m) ** 2, axis=(0, 2, 3), keepdims=True)
        return (y - m) / jnp.sqrt(v + EPS) * g.reshape(1, -1, 1, 1) + b.reshape(1, -1, 1, 1)

    out = jnp.maximum(bn(conv(x, w1), g1, b1), 0.0)
    out = bn(conv(out, w2), g2, b2) + x
    return jnp.maximum(out, 0.0)


if __name__ == "__main__":
    key = jax.random.PRNGKey(0)
    kx, kw1, kw2, kg1, kb1, kg2, kb2 = jax.random.split(key, 7)
    N, C, H, W = 2, 8, 16, 16   # in_channels = out_channels = 8, stride = 1

    x = jax.random.normal(kx, (N, C, H, W), jnp.float32)
    w1 = 0.1 * jax.random.normal(kw1, (C, C, 3, 3), jnp.float32)   # conv1.weight
    w2 = 0.1 * jax.random.normal(kw2, (C, C, 3, 3), jnp.float32)   # conv2.weight
    g1 = 1.0 + 0.1 * jax.random.normal(kg1, (C,), jnp.float32)     # bn1.weight
    b1 = 0.1 * jax.random.normal(kb1, (C,), jnp.float32)           # bn1.bias
    g2 = 1.0 + 0.1 * jax.random.normal(kg2, (C,), jnp.float32)     # bn2.weight
    b2 = 0.1 * jax.random.normal(kb2, (C,), jnp.float32)           # bn2.bias

    out = basic_block_forward(x, w1, g1, b1, w2, g2, b2)
    out = jax.block_until_ready(out)

    ref = ref_forward(x, w1, g1, b1, w2, g2, b2)
    assert out.shape == (N, C, H, W)
    err = float(np.max(np.abs(np.asarray(out) - np.asarray(ref))))
    # Tolerance loosened slightly vs. a pure-f32 kernel: conv operands are bf16
    # (f32 accumulation, f32 BN math, exact f32 residual identity).
    if not np.allclose(np.asarray(out), np.asarray(ref), rtol=5e-2, atol=5e-2):
        raise AssertionError(f"kernel/reference mismatch: max abs err = {err}")
    print("KERNEL_OK")
</pallas_src>

<mosaic_0001>
module attributes {stable_mosaic.version = 11 : i64} {
  func.func @kernel(%arg0: i32, %arg1: memref<2x18x128xf32, #tpu.memory_space<vmem>>, %arg2: memref<3x128x128xbf16, #tpu.memory_space<vmem>>, %arg3: memref<3x128x128xbf16, #tpu.memory_space<vmem>>, %arg4: memref<1x128xf32, #tpu.memory_space<vmem>>, %arg5: memref<1x128xf32, #tpu.memory_space<vmem>>, %arg6: memref<1x128xf32, #tpu.memory_space<vmem>>, %arg7: memref<1x128xf32, #tpu.memory_space<vmem>>, %arg8: memref<128x128xf32, #tpu.memory_space<vmem>>, %arg9: memref<32x128xf32, #tpu.memory_space<vmem>>, %arg10: memref<2x18x128xf32, #tpu.memory_space<vmem>>) attributes {dimension_semantics = [#tpu.dimension_semantics<arbitrary>], iteration_bounds = array<i64: 1>, scalar_prefetch = 0 : i64, scratch_operands = 1 : i64, tpu.core_type = #tpu.core_type<tc>, window_params = [{pipeline_mode = #tpu.pipeline_mode<synchronous>, transform_indices = @transform_0, window_bounds = array<i64: 2, 18, 128>}, {pipeline_mode = #tpu.pipeline_mode<synchronous>, transform_indices = @transform_1, window_bounds = array<i64: 3, 128, 128>}, {pipeline_mode = #tpu.pipeline_mode<synchronous>, transform_indices = @transform_2, window_bounds = array<i64: 3, 128, 128>}, {pipeline_mode = #tpu.pipeline_mode<synchronous>, transform_indices = @transform_3, window_bounds = array<i64: 1, 128>}, {pipeline_mode = #tpu.pipeline_mode<synchronous>, transform_indices = @transform_4, window_bounds = array<i64: 1, 128>}, {pipeline_mode = #tpu.pipeline_mode<synchronous>, transform_indices = @transform_5, window_bounds = array<i64: 1, 128>}, {pipeline_mode = #tpu.pipeline_mode<synchronous>, transform_indices = @transform_6, window_bounds = array<i64: 1, 128>}, {pipeline_mode = #tpu.pipeline_mode<synchronous>, transform_indices = @transform_7, window_bounds = array<i64: 128, 128>}, {pipeline_mode = #tpu.pipeline_mode<synchronous>, transform_indices = @transform_8, window_bounds = array<i64: 32, 128>}]} {
    %c0 = arith.constant 0 : index
    %c0_0 = arith.constant 0 : index
    %c0_1 = arith.constant 0 : index
    %0 = vector.load %arg1[%c0, %c0_0, %c0_1] : memref<2x18x128xf32, #tpu.memory_space<vmem>>, vector<2x16x128xf32>
    %1 = vector.shape_cast %0 : vector<2x16x128xf32> to vector<32x128xf32>
    %2 = arith.truncf %1 : vector<32x128xf32> to vector<32x128xbf16>
    %c0_2 = arith.constant 0 : index
    %c0_3 = arith.constant 0 : index
    %c0_4 = arith.constant 0 : index
    %3 = vector.load %arg2[%c0_2, %c0_3, %c0_4] : memref<3x128x128xbf16, #tpu.memory_space<vmem>>, vector<1x128x128xbf16>
    %4 = vector.shape_cast %3 : vector<1x128x128xbf16> to vector<128x128xbf16>
    %cst = arith.constant dense<0.000000e+00> : vector<32x128xf32>
    %5 = tpu.matmul %2, %4, %cst {dimension_numbers = #tpu.dot_dimension_numbers<[1], [0], [0], [1], [0, 0, 1, 1], [], []>} : vector<32x128xbf16>, vector<128x128xbf16>, vector<32x128xf32> -> vector<32x128xf32>
    %c0_5 = arith.constant 0 : index
    %c1 = arith.constant 1 : index
    %c0_6 = arith.constant 0 : index
    %6 = vector.load %arg1[%c0_5, %c1, %c0_6] : memref<2x18x128xf32, #tpu.memory_space<vmem>>, vector<2x16x128xf32>
    %7 = vector.shape_cast %6 : vector<2x16x128xf32> to vector<32x128xf32>
    %8 = arith.truncf %7 : vector<32x128xf32> to vector<32x128xbf16>
    %c1_7 = arith.constant 1 : index
    %c0_8 = arith.constant 0 : index
    %c0_9 = arith.constant 0 : index
    %9 = vector.load %arg2[%c1_7, %c0_8, %c0_9] : memref<3x128x128xbf16, #tpu.memory_space<vmem>>, vector<1x128x128xbf16>
    %10 = vector.shape_cast %9 : vector<1x128x128xbf16> to vector<128x128xbf16>
    %cst_10 = arith.constant dense<0.000000e+00> : vector<32x128xf32>
    %11 = tpu.matmul %8, %10, %cst_10 {dimension_numbers = #tpu.dot_dimension_numbers<[1], [0], [0], [1], [0, 0, 1, 1], [], []>} : vector<32x128xbf16>, vector<128x128xbf16>, vector<32x128xf32> -> vector<32x128xf32>
    %12 = arith.addf %5, %11 : vector<32x128xf32>
    %c0_11 = arith.constant 0 : index
    %c2 = arith.constant 2 : index
    %c0_12 = arith.constant 0 : index
    %13 = vector.load %arg1[%c0_11, %c2, %c0_12] : memref<2x18x128xf32, #tpu.memory_space<vmem>>, vector<2x16x128xf32>
    %14 = vector.shape_cast %13 : vector<2x16x128xf32> to vector<32x128xf32>
    %15 = arith.truncf %14 : vector<32x128xf32> to vector<32x128xbf16>
    %c2_13 = arith.constant 2 : index
    %c0_14 = arith.constant 0 : index
    %c0_15 = arith.constant 0 : index
    %16 = vector.load %arg2[%c2_13, %c0_14, %c0_15] : memref<3x128x128xbf16, #tpu.memory_space<vmem>>, vector<1x128x128xbf16>
    %17 = vector.shape_cast %16 : vector<1x128x128xbf16> to vector<128x128xbf16>
    %cst_16 = arith.constant dense<0.000000e+00> : vector<32x128xf32>
    %18 = tpu.matmul %15, %17, %cst_16 {dimension_numbers = #tpu.dot_dimension_numbers<[1], [0], [0], [1], [0, 0, 1, 1], [], []>} : vector<32x128xbf16>, vector<128x128xbf16>, vector<32x128xf32> -> vector<32x128xf32>
    %19 = arith.addf %12, %18 : vector<32x128xf32>
    %cst_17 = arith.constant dense<0.000000e+00> : vector<128xf32>
    %20 = vector.multi_reduction <add>, %19, %cst_17 [0] : vector<32x128xf32> to vector<128xf32>
    %21 = vector.shape_cast %20 : vector<128xf32> to vector<1x128xf32>
    %22 = arith.mulf %19, %19 : vector<32x128xf32>
    %cst_18 = arith.constant dense<0.000000e+00> : vector<128xf32>
    %23 = vector.multi_reduction <add>, %22, %cst_18 [0] : vector<32x128xf32> to vector<128xf32>
    %24 = vector.shape_cast %23 : vector<128xf32> to vector<1x128xf32>
    %c0_19 = arith.constant 0 : index
    %c0_20 = arith.constant 0 : index
    %25 = vector.load %arg8[%c0_19, %c0_20] : memref<128x128xf32, #tpu.memory_space<vmem>>, vector<128x128xf32>
    %cst_21 = arith.constant dense<0.000000e+00> : vector<1x128xf32>
    %26 = tpu.matmul %21, %25, %cst_21 {dimension_numbers = #tpu.dot_dimension_numbers<[1], [0], [0], [1], [0, 0, 1, 1], [], []>} : vector<1x128xf32>, vector<128x128xf32>, vector<1x128xf32> -> vector<1x128xf32>
    %c0_22 = arith.constant 0 : index
    %c0_23 = arith.constant 0 : index
    %27 = vector.load %arg8[%c0_22, %c0_23] : memref<128x128xf32, #tpu.memory_space<vmem>>, vector<128x128xf32>
    %cst_24 = arith.constant dense<0.000000e+00> : vector<1x128xf32>
    %28 = tpu.matmul %24, %27, %cst_24 {dimension_numbers = #tpu.dot_dimension_numbers<[1], [0], [0], [1], [0, 0, 1, 1], [], []>} : vector<1x128xf32>, vector<128x128xf32>, vector<1x128xf32> -> vector<1x128xf32>
    %cst_25 = arith.constant 0.001953125 : f32
    %29 = vector.broadcast %cst_25 : f32 to vector<1x128xf32>
    %30 = arith.mulf %26, %29 : vector<1x128xf32>
    %cst_26 = arith.constant 0.001953125 : f32
    %31 = vector.broadcast %cst_26 : f32 to vector<1x128xf32>
    %32 = arith.mulf %28, %31 : vector<1x128xf32>
    %33 = arith.mulf %30, %30 : vector<1x128xf32>
    %34 = arith.subf %32, %33 : vector<1x128xf32>
    %cst_27 = arith.constant 0.000000e+00 : f32
    %35 = vector.broadcast %cst_27 : f32 to vector<1x128xf32>
    %36 = arith.maximumf %34, %35 : vector<1x128xf32>
    %c0_28 = arith.constant 0 : index
    %c0_29 = arith.constant 0 : index
    %37 = vector.load %arg4[%c0_28, %c0_29] : memref<1x128xf32, #tpu.memory_space<vmem>>, vector<1x128xf32>
    %cst_30 = arith.constant 9.99999974E-6 : f32
    %38 = vector.broadcast %cst_30 : f32 to vector<1x128xf32>
    %39 = arith.addf %36, %38 : vector<1x128xf32>
    %40 = math.rsqrt %39 : vector<1x128xf32>
    %41 = arith.mulf %37, %40 : vector<1x128xf32>
    %c0_31 = arith.constant 0 : index
    %c0_32 = arith.constant 0 : index
    %42 = vector.load %arg5[%c0_31, %c0_32] : memref<1x128xf32, #tpu.memory_space<vmem>>, vector<1x128xf32>
    %43 = arith.mulf %30, %41 : vector<1x128xf32>
    %44 = arith.subf %42, %43 : vector<1x128xf32>
    %45 = vector.broadcast %41 : vector<1x128xf32> to vector<32x128xf32>
    %46 = arith.mulf %19, %45 : vector<32x128xf32>
    %47 = vector.broadcast %44 : vector<1x128xf32> to vector<32x128xf32>
    %48 = arith.addf %46, %47 : vector<32x128xf32>
    %cst_33 = arith.constant 0.000000e+00 : f32
    %49 = vector.broadcast %cst_33 : f32 to vector<32x128xf32>
    %50 = arith.maximumf %48, %49 : vector<32x128xf32>
    %cst_34 = arith.constant 0.000000e+00 : f32
    %51 = vector.broadcast %cst_34 : f32 to vector<2x1x128xf32>
    %c0_35 = arith.constant 0 : index
    %c0_36 = arith.constant 0 : index
    %c0_37 = arith.constant 0 : index
    %52 = vector.load %arg10[%c0_35, %c0_36, %c0_37] : memref<2x18x128xf32, #tpu.memory_space<vmem>>, vector<2x1x128xf32>
    tpu.vector_store %arg10[%c0_35, %c0_36, %c0_37], %51 {strides = array<i32>} : memref<2x18x128xf32, #tpu.memory_space<vmem>>, vector<2x1x128xf32>,
    %cst_38 = arith.constant 0.000000e+00 : f32
    %53 = vector.broadcast %cst_38 : f32 to vector<2x1x128xf32>
    %c0_39 = arith.constant 0 : index
    %c17 = arith.constant 17 : index
    %c0_40 = arith.constant 0 : index
    %54 = vector.load %arg10[%c0_39, %c17, %c0_40] : memref<2x18x128xf32, #tpu.memory_space<vmem>>, vector<2x1x128xf32>
    tpu.vector_store %arg10[%c0_39, %c17, %c0_40], %53 {strides = array<i32>} : memref<2x18x128xf32, #tpu.memory_space<vmem>>, vector<2x1x128xf32>,
    %55 = vector.shape_cast %50 : vector<32x128xf32> to vector<2x16x128xf32>
    %c0_41 = arith.constant 0 : index
    %c1_42 = arith.constant 1 : index
    %c0_43 = arith.constant 0 : index
    %56 = vector.load %arg10[%c0_41, %c1_42, %c0_43] : memref<2x18x128xf32, #tpu.memory_space<vmem>>, vector<2x16x128xf32>
    tpu.vector_store %arg10[%c0_41, %c1_42, %c0_43], %55 {strides = array<i32>} : memref<2x18x128xf32, #tpu.memory_space<vmem>>, vector<2x16x128xf32>,
    %c0_44 = arith.constant 0 : index
    %c0_45 = arith.constant 0 : index
    %c0_46 = arith.constant 0 : index
    %57 = vector.load %arg10[%c0_44, %c0_45, %c0_46] : memref<2x18x128xf32, #tpu.memory_space<vmem>>, vector<2x16x128xf32>
    %58 = vector.shape_cast %57 : vector<2x16x128xf32> to vector<32x128xf32>
    %59 = arith.truncf %58 : vector<32x128xf32> to vector<32x128xbf16>
    %c0_47 = arith.constant 0 : index
    %c0_48 = arith.constant 0 : index
    %c0_49 = arith.constant 0 : index
    %60 = vector.load %arg3[%c0_47, %c0_48, %c0_49] : memref<3x128x128xbf16, #tpu.memory_space<vmem>>, vector<1x128x128xbf16>
    %61 = vector.shape_cast %60 : vector<1x128x128xbf16> to vector<128x128xbf16>
    %cst_50 = arith.constant dense<0.000000e+00> : vector<32x128xf32>
    %62 = tpu.matmul %59, %61, %cst_50 {dimension_numbers = #tpu.dot_dimension_numbers<[1], [0], [0], [1], [0, 0, 1, 1], [], []>} : vector<32x128xbf16>, vector<128x128xbf16>, vector<32x128xf32> -> vector<32x128xf32>
    %c0_51 = arith.constant 0 : index
    %c1_52 = arith.constant 1 : index
    %c0_53 = arith.constant 0 : index
    %63 = vector.load %arg10[%c0_51, %c1_52, %c0_53] : memref<2x18x128xf32, #tpu.memory_space<vmem>>, vector<2x16x128xf32>
    %64 = vector.shape_cast %63 : vector<2x16x128xf32> to vector<32x128xf32>
    %65 = arith.truncf %64 : vector<32x128xf32> to vector<32x128xbf16>
    %c1_54 = arith.constant 1 : index
    %c0_55 = arith.constant 0 : index
    %c0_56 = arith.constant 0 : index
    %66 = vector.load %arg3[%c1_54, %c0_55, %c0_56] : memref<3x128x128xbf16, #tpu.memory_space<vmem>>, vector<1x128x128xbf16>
    %67 = vector.shape_cast %66 : vector<1x128x128xbf16> to vector<128x128xbf16>
    %cst_57 = arith.constant dense<0.000000e+00> : vector<32x128xf32>
    %68 = tpu.matmul %65, %67, %cst_57 {dimension_numbers = #tpu.dot_dimension_numbers<[1], [0], [0], [1], [0, 0, 1, 1], [], []>} : vector<32x128xbf16>, vector<128x128xbf16>, vector<32x128xf32> -> vector<32x128xf32>
    %69 = arith.addf %62, %68 : vector<32x128xf32>
    %c0_58 = arith.constant 0 : index
    %c2_59 = arith.constant 2 : index
    %c0_60 = arith.constant 0 : index
    %70 = vector.load %arg10[%c0_58, %c2_59, %c0_60] : memref<2x18x128xf32, #tpu.memory_space<vmem>>, vector<2x16x128xf32>
    %71 = vector.shape_cast %70 : vector<2x16x128xf32> to vector<32x128xf32>
    %72 = arith.truncf %71 : vector<32x128xf32> to vector<32x128xbf16>
    %c2_61 = arith.constant 2 : index
    %c0_62 = arith.constant 0 : index
    %c0_63 = arith.constant 0 : index
    %73 = vector.load %arg3[%c2_61, %c0_62, %c0_63] : memref<3x128x128xbf16, #tpu.memory_space<vmem>>, vector<1x128x128xbf16>
    %74 = vector.shape_cast %73 : vector<1x128x128xbf16> to vector<128x128xbf16>
    %cst_64 = arith.constant dense<0.000000e+00> : vector<32x128xf32>
    %75 = tpu.matmul %72, %74, %cst_64 {dimension_numbers = #tpu.dot_dimension_numbers<[1], [0], [0], [1], [0, 0, 1, 1], [], []>} : vector<32x128xbf16>, vector<128x128xbf16>, vector<32x128xf32> -> vector<32x128xf32>
    %76 = arith.addf %69, %75 : vector<32x128xf32>
    %cst_65 = arith.constant dense<0.000000e+00> : vector<128xf32>
    %77 = vector.multi_reduction <add>, %76, %cst_65 [0] : vector<32x128xf32> to vector<128xf32>
    %78 = vector.shape_cast %77 : vector<128xf32> to vector<1x128xf32>
    %79 = arith.mulf %76, %76 : vector<32x128xf32>
    %cst_66 = arith.constant dense<0.000000e+00> : vector<128xf32>
    %80 = vector.multi_reduction <add>, %79, %cst_66 [0] : vector<32x128xf32> to vector<128xf32>
    %81 = vector.shape_cast %80 : vector<128xf32> to vector<1x128xf32>
    %c0_67 = arith.constant 0 : index
    %c0_68 = arith.constant 0 : index
    %82 = vector.load %arg8[%c0_67, %c0_68] : memref<128x128xf32, #tpu.memory_space<vmem>>, vector<128x128xf32>
    %cst_69 = arith.constant dense<0.000000e+00> : vector<1x128xf32>
    %83 = tpu.matmul %78, %82, %cst_69 {dimension_numbers = #tpu.dot_dimension_numbers<[1], [0], [0], [1], [0, 0, 1, 1], [], []>} : vector<1x128xf32>, vector<128x128xf32>, vector<1x128xf32> -> vector<1x128xf32>
    %c0_70 = arith.constant 0 : index
    %c0_71 = arith.constant 0 : index
    %84 = vector.load %arg8[%c0_70, %c0_71] : memref<128x128xf32, #tpu.memory_space<vmem>>, vector<128x128xf32>
    %cst_72 = arith.constant dense<0.000000e+00> : vector<1x128xf32>
    %85 = tpu.matmul %81, %84, %cst_72 {dimension_numbers = #tpu.dot_dimension_numbers<[1], [0], [0], [1], [0, 0, 1, 1], [], []>} : vector<1x128xf32>, vector<128x128xf32>, vector<1x128xf32> -> vector<1x128xf32>
    %cst_73 = arith.constant 0.001953125 : f32
    %86 = vector.broadcast %cst_73 : f32 to vector<1x128xf32>
    %87 = arith.mulf %83, %86 : vector<1x128xf32>
    %cst_74 = arith.constant 0.001953125 : f32
    %88 = vector.broadcast %cst_74 : f32 to vector<1x128xf32>
    %89 = arith.mulf %85, %88 : vector<1x128xf32>
    %90 = arith.mulf %87, %87 : vector<1x128xf32>
    %91 = arith.subf %89, %90 : vector<1x128xf32>
    %cst_75 = arith.constant 0.000000e+00 : f32
    %92 = vector.broadcast %cst_75 : f32 to vector<1x128xf32>
    %93 = arith.maximumf %91, %92 : vector<1x128xf32>
    %c0_76 = arith.constant 0 : index
    %c0_77 = arith.constant 0 : index
    %94 = vector.load %arg6[%c0_76, %c0_77] : memref<1x128xf32, #tpu.memory_space<vmem>>, vector<1x128xf32>
    %cst_78 = arith.constant 9.99999974E-6 : f32
    %95 = vector.broadcast %cst_78 : f32 to vector<1x128xf32>
    %96 = arith.addf %93, %95 : vector<1x128xf32>
    %97 = math.rsqrt %96 : vector<1x128xf32>
    %98 = arith.mulf %94, %97 : vector<1x128xf32>
    %c0_79 = arith.constant 0 : index
    %c0_80 = arith.constant 0 : index
    %99 = vector.load %arg7[%c0_79, %c0_80] : memref<1x128xf32, #tpu.memory_space<vmem>>, vector<1x128xf32>
    %100 = arith.mulf %87, %98 : vector<1x128xf32>
    %101 = arith.subf %99, %100 : vector<1x128xf32>
    %c0_81 = arith.constant 0 : index
    %c1_82 = arith.constant 1 : index
    %c0_83 = arith.constant 0 : index
    %102 = vector.load %arg1[%c0_81, %c1_82, %c0_83] : memref<2x18x128xf32, #tpu.memory_space<vmem>>, vector<2x16x128xf32>
    %103 = vector.shape_cast %102 : vector<2x16x128xf32> to vector<32x128xf32>
    %104 = vector.broadcast %98 : vector<1x128xf32> to vector<32x128xf32>
    %105 = arith.mulf %76, %104 : vector<32x128xf32>
    %106 = vector.broadcast %101 : vector<1x128xf32> to vector<32x128xf32>
    %107 = arith.addf %105, %106 : vector<32x128xf32>
    %108 = arith.addf %107, %103 : vector<32x128xf32>
    %cst_84 = arith.constant 0.000000e+00 : f32
    %109 = vector.broadcast %cst_84 : f32 to vector<32x128xf32>
    %110 = arith.maximumf %108, %109 : vector<32x128xf32>
    %c0_85 = arith.constant 0 : index
    %c0_86 = arith.constant 0 : index
    %111 = vector.load %arg9[%c0_85, %c0_86] : memref<32x128xf32, #tpu.memory_space<vmem>>, vector<32x128xf32>
    tpu.vector_store %arg9[%c0_85, %c0_86], %110 {strides = array<i32>} : memref<32x128xf32, #tpu.memory_space<vmem>>, vector<32x128xf32>,
    return
  }
  func.func @transform_0(%arg0: i32) -> (i32, i32, i32) {
    %c0_i32 = arith.constant 0 : i32
    %c0_i32_0 = arith.constant 0 : i32
    %c0_i32_1 = arith.constant 0 : i32
    %c0_i32_2 = arith.constant 0 : i32
    return %c0_i32, %c0_i32_0, %c0_i32_1 : i32, i32, i32
  }
  func.func @transform_1(%arg0: i32) -> (i32, i32, i32) {
    %c0_i32 = arith.constant 0 : i32
    %c0_i32_0 = arith.constant 0 : i32
    %c0_i32_1 = arith.constant 0 : i32
    %c0_i32_2 = arith.constant 0 : i32
    return %c0_i32, %c0_i32_0, %c0_i32_1 : i32, i32, i32
  }
  func.func @transform_2(%arg0: i32) -> (i32, i32, i32) {
    %c0_i32 = arith.constant 0 : i32
    %c0_i32_0 = arith.constant 0 : i32
    %c0_i32_1 = arith.constant 0 : i32
    %c0_i32_2 = arith.constant 0 : i32
    return %c0_i32, %c0_i32_0, %c0_i32_1 : i32, i32, i32
  }
  func.func @transform_3(%arg0: i32) -> (i32, i32) {
    %c0_i32 = arith.constant 0 : i32
    %c0_i32_0 = arith.constant 0 : i32
    %c0_i32_1 = arith.constant 0 : i32
    return %c0_i32, %c0_i32_0 : i32, i32
  }
  func.func @transform_4(%arg0: i32) -> (i32, i32) {
    %c0_i32 = arith.constant 0 : i32
    %c0_i32_0 = arith.constant 0 : i32
    %c0_i32_1 = arith.constant 0 : i32
    return %c0_i32, %c0_i32_0 : i32, i32
  }
  func.func @transform_5(%arg0: i32) -> (i32, i32) {
    %c0_i32 = arith.constant 0 : i32
    %c0_i32_0 = arith.constant 0 : i32
    %c0_i32_1 = arith.constant 0 : i32
    return %c0_i32, %c0_i32_0 : i32, i32
  }
  func.func @transform_6(%arg0: i32) -> (i32, i32) {
    %c0_i32 = arith.constant 0 : i32
    %c0_i32_0 = arith.constant 0 : i32
    %c0_i32_1 = arith.constant 0 : i32
    return %c0_i32, %c0_i32_0 : i32, i32
  }
  func.func @transform_7(%arg0: i32) -> (i32, i32) {
    %c0_i32 = arith.constant 0 : i32
    %c0_i32_0 = arith.constant 0 : i32
    %c0_i32_1 = arith.constant 0 : i32
    return %c0_i32, %c0_i32_0 : i32, i32
  }
  func.func @transform_8(%arg0: i32) -> (i32, i32) {
    %c0_i32 = arith.constant 0 : i32
    %c0_i32_0 = arith.constant 0 : i32
    %c0_i32_1 = arith.constant 0 : i32
    return %c0_i32, %c0_i32_0 : i32, i32
  }
}

</mosaic_0001>

<llo_original>
// kernel: tile.23
$region0: #{tile.23}
  #allocation0 [shape = 's32[1]{0}', space=sflag, size = 0x4, scoped, tag = 'scoped memory for tile.23']
  %s0 = inlined_call_operand.vmem [shape: f32[8], index: 0, kind: input, shape index: {}]
  %s1 = inlined_call_operand.vmem [shape: f32[16,8], index: 1, kind: output, shape index: {}]
  // Predicated region
  $region2: #{tile.23} parent=0 // pred_check
    _
  $region3: #{tile.23} parent=0 // pred_check_branch
    %3 = sbr.rel (0) target = $region5
  $region4: #{tile.23} parent=0 // pred_region
    _
  $region5: #{tile.23} parent=0 // pred_fallthru
    _
  %v4 = vld [vmem:[%s0] ss:$0 sm:$0xff]
  %5 = vst [vmem:[%s1] sm:$0xff] %v4
  %s6 = scalar_lea.vmem %s1, 8
  %7 = vst [vmem:[%s6] sm:$0xff] %v4

// kernel: tile.24
$region0: #{tile.24}
  %s0 = inlined_call_operand.vmem [shape: f32[16,8], index: 0, kind: input, shape index: {}]
  %s1 = inlined_call_operand.vmem [shape: f32[1,128], index: 1, kind: output, shape index: {}]
  $region1: #{tile.24} parent=0
    #allocation0 [shape = 'u8[4096]{0}', space=vmem, size = 0x1000, scoped, tag = 'scoped mem for output reshape']
    %v2 = vld [vmem:[%s0] sm:$0x1]
    %vm3 = vcmask 64512
    %4 = vst.msk [vmem:[#allocation0] sm:$0x1] %vm3, %v2
    %s5 = scalar_lea.vmem %s0, 15
    %v6 = vld [vmem:[%s5] sm:$0x1]
    %7 = vrot.lane.b32.xlu0 %v6, 120
    %v8 = vpop.permute.xlu0 %7
    %vm9 = vcmask 1048512
    %10 = vst.msk [vmem:[#allocation0] sm:$0x1] %vm9, %v8
    %s11 = scalar_lea.vmem %s0, 14
    %v12 = vld [vmem:[%s11] sm:$0x1]
    %13 = vrot.lane.b32.xlu0 %v12, 112
    %v14 = vpop.permute.xlu0 %13
    %vm15 = vcmask 982912
    %16 = vst.msk [vmem:[#allocation0] sm:$0x1] %vm15, %v14
    %s17 = scalar_lea.vmem %s0, 13
    %v18 = vld [vmem:[%s17] sm:$0x1]
    %19 = vrot.lane.b32.xlu0 %v18, 104
    %v20 = vpop.permute.xlu0 %19
    %vm21 = vcmask 917312
    %22 = vst.msk [vmem:[#allocation0] sm:$0x1] %vm21, %v20
    %s23 = scalar_lea.vmem %s0, 12
    %v24 = vld [vmem:[%s23] sm:$0x1]
    %25 = vrot.lane.b32.xlu0 %v24, 96
    %v26 = vpop.permute.xlu0 %25
    %vm27 = vcmask 851712
    %28 = vst.msk [vmem:[#allocation0] sm:$0x1] %vm27, %v26
    %s29 = scalar_lea.vmem %s0, 11
    %v30 = vld [vmem:[%s29] sm:$0x1]
    %31 = vrot.lane.b32.xlu0 %v30, 88
    %v32 = vpop.permute.xlu0 %31
    %vm33 = vcmask 786112
    %34 = vst.msk [vmem:[#allocation0] sm:$0x1] %vm33, %v32
    %s35 = scalar_lea.vmem %s0, 10
    %v36 = vld [vmem:[%s35] sm:$0x1]
    %37 = vrot.lane.b32.xlu0 %v36, 80
    %v38 = vpop.permute.xlu0 %37
    %vm39 = vcmask 720512
    %40 = vst.msk [vmem:[#allocation0] sm:$0x1] %vm39, %v38
    %s41 = scalar_lea.vmem %s0, 9
    %v42 = vld [vmem:[%s41] sm:$0x1]
    %43 = vrot.lane.b32.xlu0 %v42, 72
    %v44 = vpop.permute.xlu0 %43
    %vm45 = vcmask 654912
    %46 = vst.msk [vmem:[#allocation0] sm:$0x1] %vm45, %v44
    %s47 = scalar_lea.vmem %s0, 8
    %v48 = vld [vmem:[%s47] sm:$0x1]
    %49 = vrot.lane.b32.xlu0 %v48, 64
    %v50 = vpop.permute.xlu0 %49
    %vm51 = vcmask 589312
    %52 = vst.msk [vmem:[#allocation0] sm:$0x1] %vm51, %v50
    %s53 = scalar_lea.vmem %s0, 7
    %v54 = vld [vmem:[%s53] sm:$0x1]
    %55 = vrot.lane.b32.xlu0 %v54, 56
    %v56 = vpop.permute.xlu0 %55
    %vm57 = vcmask 523712
    %58 = vst.msk [vmem:[#allocation0] sm:$0x1] %vm57, %v56
    %s59 = scalar_lea.vmem %s0, 6
    %v60 = vld [vmem:[%s59] sm:$0x1]
    %61 = vrot.lane.b32.xlu0 %v60, 48
    %v62 = vpop.permute.xlu0 %61
    %vm63 = vcmask 458112
    %64 = vst.msk [vmem:[#allocation0] sm:$0x1] %vm63, %v62
    %s65 = scalar_lea.vmem %s0, 5
    %v66 = vld [vmem:[%s65] sm:$0x1]
    %67 = vrot.lane.b32.xlu0 %v66, 40
    %v68 = vpop.permute.xlu0 %67
    %vm69 = vcmask 392512
    %70 = vst.msk [vmem:[#allocation0] sm:$0x1] %vm69, %v68
    %s71 = scalar_lea.vmem %s0, 4
    %v72 = vld [vmem:[%s71] sm:$0x1]
    %73 = vrot.lane.b32.xlu0 %v72, 32
    %v74 = vpop.permute.xlu0 %73
    %vm75 = vcmask 326912
    %76 = vst.msk [vmem:[#allocation0] sm:$0x1] %vm75, %v74
    %s77 = scalar_lea.vmem %s0, 3
    %v78 = vld [vmem:[%s77] sm:$0x1]
    %79 = vrot.lane.b32.xlu0 %v78, 24
    %v80 = vpop.permute.xlu0 %79
    %vm81 = vcmask 261312
    %82 = vst.msk [vmem:[#allocation0] sm:$0x1] %vm81, %v80
    %s83 = scalar_lea.vmem %s0, 2
    %v84 = vld [vmem:[%s83] sm:$0x1]
    %85 = vrot.lane.b32.xlu0 %v84, 16
    %v86 = vpop.permute.xlu0 %85
    %vm87 = vcmask 195712
    %88 = vst.msk [vmem:[#allocation0] sm:$0x1] %vm87, %v86
    %s89 = scalar_lea.vmem %s0, 1
    %v90 = vld [vmem:[%s89] sm:$0x1]
    %91 = vrot.lane.b32.xlu0 %v90, 8
    %v92 = vpop.permute.xlu0 %91
    %vm93 = vcmask 130112
    %94 = vst.msk [vmem:[#allocation0] sm:$0x1] %vm93, %v92
    %s96 = ssub.s32 2, 1
    %v97 = vld [vmem:[#allocation0] sm:%s96]
    %s99 = ssub.s32 2, 1
    %100 = vst [vmem:[%s1] sm:%s99] %v97

// kernel: basic_block_forward.1
$region0: #{basic_block_forward.1}
  #allocation0 [shape = 'u32[]', space=smem, size = 0x4, offset = 0x4, fixed_abs, tag = 'smem constant byte address 0x4 - core index']
  #allocation1 [shape = 'u32[72,128]{1,0:T(1,128)}', space=vmem, size = 0x9000, scoped, tag = 'internal scratch']
  #allocation2 [shape = 'f32[2,18,128]{2,1,0:T(8,128)}', space=vmem, size = 0x6000, scoped, tag = 'scratch operand']
  %s0 = inlined_call_operand.vmem [shape: f32[2,18,128], index: 0, kind: input, shape index: {}]
  %s1 = inlined_call_operand.vmem [shape: bf16[3,128,128], index: 1, kind: input, shape index: {}]
  %s2 = inlined_call_operand.vmem [shape: bf16[3,128,128], index: 2, kind: input, shape index: {}]
  %s3 = inlined_call_operand.vmem [shape: f32[1,128], index: 3, kind: input, shape index: {}]
  %s4 = inlined_call_operand.vmem [shape: f32[1,128], index: 4, kind: input, shape index: {}]
  %s5 = inlined_call_operand.vmem [shape: f32[1,128], index: 5, kind: input, shape index: {}]
  %s6 = inlined_call_operand.vmem [shape: f32[1,128], index: 6, kind: input, shape index: {}]
  %s7 = inlined_call_operand.vmem [shape: f32[128,128], index: 7, kind: input, shape index: {}]
  %s8 = inlined_call_operand.vmem [shape: f32[32,128], index: 8, kind: output, shape index: {}]
  %s9 = sld [smem:[#allocation0]]
  $region42: #{basic_block_forward.1} parent=0
    _
  %s11 = ssub.s32 1, %s9
  %s12 = scalar_select 0, %s11, %s9
  // Predicated region
  $region2: #{basic_block_forward.1} parent=0 // pred_check
    _
  $region3: #{basic_block_forward.1} parent=0 // pred_check_branch
    %14 = sbr.rel (0) target = $region5
  $region4: #{basic_block_forward.1} parent=0 // pred_region
    _
  $region5: #{basic_block_forward.1} parent=0 // pred_fallthru
    _
  // Predicated region
  $region6: #{basic_block_forward.1} parent=0 // pred_check
    _
  $region7: #{basic_block_forward.1} parent=0 // pred_check_branch
    %16 = sbr.rel (0) target = $region9
  $region8: #{basic_block_forward.1} parent=0 // pred_region
    _
  $region9: #{basic_block_forward.1} parent=0 // pred_fallthru
    _
  // Predicated region
  $region10: #{basic_block_forward.1} parent=0 // pred_check
    _
  $region11: #{basic_block_forward.1} parent=0 // pred_check_branch
    %18 = sbr.rel (0) target = $region13
  $region12: #{basic_block_forward.1} parent=0 // pred_region
    _
  $region13: #{basic_block_forward.1} parent=0 // pred_fallthru
    _
  // Predicated region
  $region14: #{basic_block_forward.1} parent=0 // pred_check
    _
  $region15: #{basic_block_forward.1} parent=0 // pred_check_branch
    %20 = sbr.rel (0) target = $region17
  $region16: #{basic_block_forward.1} parent=0 // pred_region
    _
  $region17: #{basic_block_forward.1} parent=0 // pred_fallthru
    _
  // Predicated region
  $region18: #{basic_block_forward.1} parent=0 // pred_check
    _
  $region19: #{basic_block_forward.1} parent=0 // pred_check_branch
    %22 = sbr.rel (0) target = $region21
  $region20: #{basic_block_forward.1} parent=0 // pred_region
    _
  $region21: #{basic_block_forward.1} parent=0 // pred_fallthru
    _
  // Predicated region
  $region22: #{basic_block_forward.1} parent=0 // pred_check
    _
  $region23: #{basic_block_forward.1} parent=0 // pred_check_branch
    %24 = sbr.rel (0) target = $region25
  $region24: #{basic_block_forward.1} parent=0 // pred_region
    _
  $region25: #{basic_block_forward.1} parent=0 // pred_fallthru
    _
  // Predicated region
  $region26: #{basic_block_forward.1} parent=0 // pred_check
    _
  $region27: #{basic_block_forward.1} parent=0 // pred_check_branch
    %26 = sbr.rel (0) target = $region29
  $region28: #{basic_block_forward.1} parent=0 // pred_region
    _
  $region29: #{basic_block_forward.1} parent=0 // pred_fallthru
    _
  // Predicated region
  $region30: #{basic_block_forward.1} parent=0 // pred_check
    _
  $region31: #{basic_block_forward.1} parent=0 // pred_check_branch
    %28 = sbr.rel (0) target = $region33
  $region32: #{basic_block_forward.1} parent=0 // pred_region
    _
  $region33: #{basic_block_forward.1} parent=0 // pred_fallthru
    _
  %v29 = vld [vmem:[%s0] sm:$0xff]
  %v30 = vld [vmem:[%s0 + $0x8] sm:$0xff]
  %v31 = vld [vmem:[%s0 + $0x18] sm:$0xff]
  %v32 = vld [vmem:[%s0 + $0x20] sm:$0xff]
  %v33 = vpack.c.bf16 %v30, %v29
  %v34 = vpack.c.bf16 %v32, %v31
  %v35 = vld [vmem:[%s1] sm:$0xf]
  %v36 = vld [vmem:[%s1 + $0x4] sm:$0xf]
  %v37 = vld [vmem:[%s1 + $0x8] sm:$0xf]
  %v38 = vld [vmem:[%s1 + $0xc] sm:$0xf]
  %v39 = vld [vmem:[%s1 + $0x10] sm:$0xf]
  %v40 = vld [vmem:[%s1 + $0x14] sm:$0xf]
  %v41 = vld [vmem:[%s1 + $0x18] sm:$0xf]
  %v42 = vld [vmem:[%s1 + $0x1c] sm:$0xf]
  %v43 = vld [vmem:[%s1 + $0x20] sm:$0xf]
  %v44 = vld [vmem:[%s1 + $0x24] sm:$0xf]
  %v45 = vld [vmem:[%s1 + $0x28] sm:$0xf]
  %v46 = vld [vmem:[%s1 + $0x2c] sm:$0xf]
  %v47 = vld [vmem:[%s1 + $0x30] sm:$0xf]
  %v48 = vld [vmem:[%s1 + $0x34] sm:$0xf]
  %v49 = vld [vmem:[%s1 + $0x38] sm:$0xf]
  %v50 = vld [vmem:[%s1 + $0x3c] sm:$0xf]
  %v51 = vld [vmem:[%s0 + $0x1] sm:$0xff]
  %v52 = vld [vmem:[%s0 + $0x9] sm:$0xff]
  %v53 = vld [vmem:[%s0 + $0x19] sm:$0xff]
  %v54 = vld [vmem:[%s0 + $0x21] sm:$0xff]
  %v55 = vpack.c.bf16 %v52, %v51
  %v56 = vpack.c.bf16 %v54, %v53
  %s57 = scalar_lea.vmem %s1, 64
  %v58 = vld [vmem:[%s57] sm:$0xf]
  %v59 = vld [vmem:[%s57 + $0x4] sm:$0xf]
  %v60 = vld [vmem:[%s57 + $0x8] sm:$0xf]
  %v61 = vld [vmem:[%s57 + $0xc] sm:$0xf]
  %v62 = vld [vmem:[%s57 + $0x10] sm:$0xf]
  %v63 = vld [vmem:[%s57 + $0x14] sm:$0xf]
  %v64 = vld [vmem:[%s57 + $0x18] sm:$0xf]
  %v65 = vld [vmem:[%s57 + $0x1c] sm:$0xf]
  %v66 = vld [vmem:[%s57 + $0x20] sm:$0xf]
  %v67 = vld [vmem:[%s57 + $0x24] sm:$0xf]
  %v68 = vld [vmem:[%s57 + $0x28] sm:$0xf]
  %v69 = vld [vmem:[%s57 + $0x2c] sm:$0xf]
  %v70 = vld [vmem:[%s57 + $0x30] sm:$0xf]
  %v71 = vld [vmem:[%s57 + $0x34] sm:$0xf]
  %v72 = vld [vmem:[%s57 + $0x38] sm:$0xf]
  %v73 = vld [vmem:[%s57 + $0x3c] sm:$0xf]
  %v90 = vunpack.c.l.b16 %v58
  %v91 = vunpack.c.l.b16 %v59
  %v92 = vunpack.c.l.b16 %v60
  %v93 = vunpack.c.l.b16 %v61
  %v94 = vunpack.c.l.b16 %v62
  %v95 = vunpack.c.l.b16 %v63
  %v96 = vunpack.c.l.b16 %v64
  %v97 = vunpack.c.l.b16 %v65
  %v98 = vunpack.c.l.b16 %v66
  %v99 = vunpack.c.l.b16 %v67
  %v100 = vunpack.c.l.b16 %v68
  %v101 = vunpack.c.l.b16 %v69
  %v102 = vunpack.c.l.b16 %v70
  %v103 = vunpack.c.l.b16 %v71
  %v104 = vunpack.c.l.b16 %v72
  %v105 = vunpack.c.l.b16 %v73
  %v106 = vpack.c.b16 %v91, %v90
  %v107 = vpack.c.b16 %v93, %v92
  %v108 = vpack.c.b16 %v95, %v94
  %v109 = vpack.c.b16 %v97, %v96
  %v110 = vpack.c.b16 %v99, %v98
  %v111 = vpack.c.b16 %v101, %v100
  %v112 = vpack.c.b16 %v103, %v102
  %v113 = vpack.c.b16 %v105, %v104
  %122 = vmatpush.bf16.msra.mxu0 %v113
  %123 = vmatpush.bf16.msra.mxu0 %v112
  %124 = vmatpush.bf16.msra.mxu0 %v111
  %125 = vmatpush.bf16.msra.mxu0 %v110
  %126 = vmatpush.bf16.msra.mxu0 %v109
  %127 = vmatpush.bf16.msra.mxu0 %v108
  %128 = vmatpush.bf16.msra.mxu0 %v107
  %129 = vmatpush.bf16.msra.mxu0 %v106
  %130 = vmatmul.bf16.gmra.mxu0 %v55
  %v131 = vpop.f32.mrf.mxu0
  %v132 = vadd.f32 0.0, %v131
  %v133 = vpop.f32.mrf.mxu0
  %v134 = vadd.f32 0.0, %v133
  %135 = vmatmul.bf16.gmra.mxu0 %v56
  %v136 = vpop.f32.mrf.mxu0
  %v137 = vadd.f32 0.0, %v136
  %v138 = vpop.f32.mrf.mxu0
  %v139 = vadd.f32 0.0, %v138
  %140 = vdwg.mxu0
  %v157 = vunpack.c.l.b16 %v35
  %v158 = vunpack.c.l.b16 %v36
  %v159 = vunpack.c.l.b16 %v37
  %v160 = vunpack.c.l.b16 %v38
  %v161 = vunpack.c.l.b16 %v39
  %v162 = vunpack.c.l.b16 %v40
  %v163 = vunpack.c.l.b16 %v41
  %v164 = vunpack.c.l.b16 %v42
  %v165 = vunpack.c.l.b16 %v43
  %v166 = vunpack.c.l.b16 %v44
  %v167 = vunpack.c.l.b16 %v45
  %v168 = vunpack.c.l.b16 %v46
  %v169 = vunpack.c.l.b16 %v47
  %v170 = vunpack.c.l.b16 %v48
  %v171 = vunpack.c.l.b16 %v49
  %v172 = vunpack.c.l.b16 %v50
  %v173 = vpack.c.b16 %v158, %v157
  %v174 = vpack.c.b16 %v160, %v159
  %v175 = vpack.c.b16 %v162, %v161
  %v176 = vpack.c.b16 %v164, %v163
  %v177 = vpack.c.b16 %v166, %v165
  %v178 = vpack.c.b16 %v168, %v167
  %v179 = vpack.c.b16 %v170, %v169
  %v180 = vpack.c.b16 %v172, %v171
  %189 = vmatpush.bf16.msra.mxu0 %v180
  %190 = vmatpush.bf16.msra.mxu0 %v179
  %191 = vmatpush.bf16.msra.mxu0 %v178
  %192 = vmatpush.bf16.msra.mxu0 %v177
  %193 = vmatpush.bf16.msra.mxu0 %v176
  %194 = vmatpush.bf16.msra.mxu0 %v175
  %195 = vmatpush.bf16.msra.mxu0 %v174
  %196 = vmatpush.bf16.msra.mxu0 %v173
  %197 = vmatmul.bf16.gmra.mxu0 %v33
  %v198 = vpop.f32.mrf.mxu0
  %v199 = vadd.f32 %v132, %v198
  %v200 = vpop.f32.mrf.mxu0
  %v201 = vadd.f32 %v134, %v200
  %202 = vmatmul.bf16.gmra.mxu0 %v34
  %v203 = vpop.f32.mrf.mxu0
  %v204 = vadd.f32 %v137, %v203
  %v205 = vpop.f32.mrf.mxu0
  %v206 = vadd.f32 %v139, %v205
  %207 = vdwg.mxu0
  %v208 = vld [vmem:[%s0 + $0x2] sm:$0xff]
  %v209 = vld [vmem:[%s0 + $0xa] sm:$0xff]
  %v210 = vld [vmem:[%s0 + $0x1a] sm:$0xff]
  %v211 = vld [vmem:[%s0 + $0x22] sm:$0xff]
  %v212 = vpack.c.bf16 %v209, %v208
  %v213 = vpack.c.bf16 %v211, %v210
  %s214 = scalar_lea.vmem %s1, 128
  %v215 = vld [vmem:[%s214] sm:$0xf]
  %v216 = vld [vmem:[%s214 + $0x4] sm:$0xf]
  %v217 = vld [vmem:[%s214 + $0x8] sm:$0xf]
  %v218 = vld [vmem:[%s214 + $0xc] sm:$0xf]
  %v219 = vld [vmem:[%s214 + $0x10] sm:$0xf]
  %v220 = vld [vmem:[%s214 + $0x14] sm:$0xf]
  %v221 = vld [vmem:[%s214 + $0x18] sm:$0xf]
  %v222 = vld [vmem:[%s214 + $0x1c] sm:$0xf]
  %v223 = vld [vmem:[%s214 + $0x20] sm:$0xf]
  %v224 = vld [vmem:[%s214 + $0x24] sm:$0xf]
  %v225 = vld [vmem:[%s214 + $0x28] sm:$0xf]
  %v226 = vld [vmem:[%s214 + $0x2c] sm:$0xf]
  %v227 = vld [vmem:[%s214 + $0x30] sm:$0xf]
  %v228 = vld [vmem:[%s214 + $0x34] sm:$0xf]
  %v229 = vld [vmem:[%s214 + $0x38] sm:$0xf]
  %v230 = vld [vmem:[%s214 + $0x3c] sm:$0xf]
  %v247 = vunpack.c.l.b16 %v215
  %v248 = vunpack.c.l.b16 %v216
  %v249 = vunpack.c.l.b16 %v217
  %v250 = vunpack.c.l.b16 %v218
  %v251 = vunpack.c.l.b16 %v219
  %v252 = vunpack.c.l.b16 %v220
  %v253 = vunpack.c.l.b16 %v221
  %v254 = vunpack.c.l.b16 %v222
  %v255 = vunpack.c.l.b16 %v223
  %v256 = vunpack.c.l.b16 %v224
  %v257 = vunpack.c.l.b16 %v225
  %v258 = vunpack.c.l.b16 %v226
  %v259 = vunpack.c.l.b16 %v227
  %v260 = vunpack.c.l.b16 %v228
  %v261 = vunpack.c.l.b16 %v229
  %v262 = vunpack.c.l.b16 %v230
  %v263 = vpack.c.b16 %v248, %v247
  %v264 = vpack.c.b16 %v250, %v249
  %v265 = vpack.c.b16 %v252, %v251
  %v266 = vpack.c.b16 %v254, %v253
  %v267 = vpack.c.b16 %v256, %v255
  %v268 = vpack.c.b16 %v258, %v257
  %v269 = vpack.c.b16 %v260, %v259
  %v270 = vpack.c.b16 %v262, %v261
  %279 = vmatpush.bf16.msra.mxu0 %v270
  %280 = vmatpush.bf16.msra.mxu0 %v269
  %281 = vmatpush.bf16.msra.mxu0 %v268
  %282 = vmatpush.bf16.msra.mxu0 %v267
  %283 = vmatpush.bf16.msra.mxu0 %v266
  %284 = vmatpush.bf16.msra.mxu0 %v265
  %285 = vmatpush.bf16.msra.mxu0 %v264
  %286 = vmatpush.bf16.msra.mxu0 %v263
  %287 = vmatmul.bf16.gmra.mxu0 %v212
  %v288 = vpop.f32.mrf.mxu0
  %v289 = vadd.f32 0.0, %v288
  %v290 = vpop.f32.mrf.mxu0
  %v291 = vadd.f32 0.0, %v290
  %292 = vmatmul.bf16.gmra.mxu0 %v213
  %v293 = vpop.f32.mrf.mxu0
  %v294 = vadd.f32 0.0, %v293
  %v295 = vpop.f32.mrf.mxu0
  %v296 = vadd.f32 0.0, %v295
  %297 = vdwg.mxu0
  %v298 = vadd.f32 %v199, %v289
  %v299 = vadd.f32 %v201, %v291
  %v300 = vadd.f32 %v204, %v294
  %v301 = vadd.f32 %v206, %v296
  %v302 = vadd.f32 %v298, %v299
  %v303 = vadd.f32 %v302, %v300
  %v304 = vadd.f32 %v303, %v301
  %v305 = vrot.slane %v304, 4
  %v306 = vadd.f32 %v304, %v305
  %v307 = vrot.slane %v306, 2
  %v308 = vadd.f32 %v306, %v307
  %v309 = vrot.slane %v308, 1
  %v310 = vadd.f32 %v308, %v309
  %v311 = vmul.f32 %v298, %v298
  %v312 = vmul.f32 %v299, %v299
  %v313 = vmul.f32 %v300, %v300
  %v314 = vmul.f32 %v301, %v301
  %v315 = vadd.f32 %v311, %v312
  %v316 = vadd.f32 %v315, %v313
  %v317 = vadd.f32 %v316, %v314
  %v318 = vrot.slane %v317, 4
  %v319 = vadd.f32 %v317, %v318
  %v320 = vrot.slane %v319, 2
  %v321 = vadd.f32 %v319, %v320
  %v322 = vrot.slane %v321, 1
  %v323 = vadd.f32 %v321, %v322
  %v324 = vld [vmem:[%s7] sm:$0xff]
  %v325 = vld [vmem:[%s7 + $0x8] sm:$0xff]
  %v326 = vld [vmem:[%s7 + $0x10] sm:$0xff]
  %v327 = vld [vmem:[%s7 + $0x18] sm:$0xff]
  %v328 = vld [vmem:[%s7 + $0x20] sm:$0xff]
  %v329 = vld [vmem:[%s7 + $0x28] sm:$0xff]
  %v330 = vld [vmem:[%s7 + $0x30] sm:$0xff]
  %v331 = vld [vmem:[%s7 + $0x38] sm:$0xff]
  %v332 = vld [vmem:[%s7 + $0x40] sm:$0xff]
  %v333 = vld [vmem:[%s7 + $0x48] sm:$0xff]
  %v334 = vld [vmem:[%s7 + $0x50] sm:$0xff]
  %v335 = vld [vmem:[%s7 + $0x58] sm:$0xff]
  %v336 = vld [vmem:[%s7 + $0x60] sm:$0xff]
  %v337 = vld [vmem:[%s7 + $0x68] sm:$0xff]
  %v338 = vld [vmem:[%s7 + $0x70] sm:$0xff]
  %v339 = vld [vmem:[%s7 + $0x78] sm:$0xff]
  %340 = vmatpush.msra.mxu0 %v339
  %341 = vmatpush.msra.mxu0 %v338
  %342 = vmatpush.msra.mxu0 %v337
  %343 = vmatpush.msra.mxu0 %v336
  %344 = vmatpush.msra.mxu0 %v335
  %345 = vmatpush.msra.mxu0 %v334
  %346 = vmatpush.msra.mxu0 %v333
  %347 = vmatpush.msra.mxu0 %v332
  %348 = vmatpush.msra.mxu0 %v331
  %349 = vmatpush.msra.mxu0 %v330
  %350 = vmatpush.msra.mxu0 %v329
  %351 = vmatpush.msra.mxu0 %v328
  %352 = vmatpush.msra.mxu0 %v327
  %353 = vmatpush.msra.mxu0 %v326
  %354 = vmatpush.msra.mxu0 %v325
  %355 = vmatpush.msra.mxu0 %v324
  %356 = vmatmul.f32.gmra.mxu0 %v310
  %v357 = vpop.f32.mrf.mxu0
  %v358 = vadd.f32 0.0, %v357
  %359 = vdwg.mxu0
  %360 = vmatpush.msra.mxu0 %v339
  %361 = vmatpush.msra.mxu0 %v338
  %362 = vmatpush.msra.mxu0 %v337
  %363 = vmatpush.msra.mxu0 %v336
  %364 = vmatpush.msra.mxu0 %v335
  %365 = vmatpush.msra.mxu0 %v334
  %366 = vmatpush.msra.mxu0 %v333
  %367 = vmatpush.msra.mxu0 %v332
  %368 = vmatpush.msra.mxu0 %v331
  %369 = vmatpush.msra.mxu0 %v330
  %370 = vmatpush.msra.mxu0 %v329
  %371 = vmatpush.msra.mxu0 %v328
  %372 = vmatpush.msra.mxu0 %v327
  %373 = vmatpush.msra.mxu0 %v326
  %374 = vmatpush.msra.mxu0 %v325
  %375 = vmatpush.msra.mxu0 %v324
  %376 = vmatmul.f32.gmra.mxu0 %v323
  %v377 = vpop.f32.mrf.mxu0
  %v378 = vadd.f32 0.0, %v377
  %379 = vdwg.mxu0
  %v380 = vmul.f32 %v358, 0.001953125
  %v381 = vmul.f32 %v378, 0.001953125
  %v382 = vmul.f32 %v380, %v380
  %v383 = vsub.f32 %v381, %v382
  %v384 = vmax.f32 %v383, 0.0
  %v385 = vld [vmem:[%s3] sm:$0x1]
  %v386 = vadd.f32 %v384, 1e-05
  %v387 = vrsqrt.pop %v386
  %v388 = vmul.f32 %v387, %v386
  %v389 = vmul.f32 %v388, %v387
  %v390 = vmul.f32 0.5, %v389
  %v391 = vsub.f32 1.5, %v390
  %v392 = vmul.f32 %v387, %v391
  %vm393 = vweird.f32 %v386
  %vm394 = vweird.f32 %v387
  %vm395 = vmor %vm393, %vm394
  %v396 = vsel %vm395, %v387, %v392
  %v397 = vmul.f32 %v385, %v396
  %v398 = vld [vmem:[%s4] sm:$0x1]
  %v399 = vmul.f32 %v380, %v397
  %v400 = vsub.f32 %v398, %v399
  %v402 = vperm.slane %v397, 0
  %v404 = vmul.f32 %v298, %v402
  %v405 = vmul.f32 %v299, %v402
  %v406 = vmul.f32 %v300, %v402
  %v407 = vmul.f32 %v301, %v402
  %v409 = vperm.slane %v400, 0
  %v411 = vadd.f32 %v404, %v409
  %v412 = vadd.f32 %v405, %v409
  %v413 = vadd.f32 %v406, %v409
  %v414 = vadd.f32 %v407, %v409
  %v415 = vmax.f32 %v411, 0.0
  %v416 = vmax.f32 %v412, 0.0
  %v417 = vmax.f32 %v413, 0.0
  %v418 = vmax.f32 %v414, 0.0
  %419 = vst [vmem:[#allocation2] sm:$0x1] 0.0
  %420 = vst [vmem:[#allocation2 + $0x18] sm:$0x1] 0.0
  %421 = vst [vmem:[#allocation2 + $0x11] sm:$0x1] 0.0
  %422 = vst [vmem:[#allocation2 + $0x29] sm:$0x1] 0.0
  %423 = vst [vmem:[#allocation2 + $0x1] sm:$0xff] %v415
  %424 = vst [vmem:[#allocation2 + $0x9] sm:$0xff] %v416
  %425 = vst [vmem:[#allocation2 + $0x19] sm:$0xff] %v417
  %426 = vst [vmem:[#allocation2 + $0x21] sm:$0xff] %v418
  %v427 = vld [vmem:[#allocation2] sm:$0xff]
  %v428 = vld [vmem:[#allocation2 + $0x8] sm:$0xff]
  %v429 = vld [vmem:[#allocation2 + $0x18] sm:$0xff]
  %v430 = vld [vmem:[#allocation2 + $0x20] sm:$0xff]
  %v431 = vpack.c.bf16 %v428, %v427
  %v432 = vpack.c.bf16 %v430, %v429
  %v433 = vld [vmem:[%s2] sm:$0xf]
  %v434 = vld [vmem:[%s2 + $0x4] sm:$0xf]
  %v435 = vld [vmem:[%s2 + $0x8] sm:$0xf]
  %v436 = vld [vmem:[%s2 + $0xc] sm:$0xf]
  %v437 = vld [vmem:[%s2 + $0x10] sm:$0xf]
  %v438 = vld [vmem:[%s2 + $0x14] sm:$0xf]
  %v439 = vld [vmem:[%s2 + $0x18] sm:$0xf]
  %v440 = vld [vmem:[%s2 + $0x1c] sm:$0xf]
  %v441 = vld [vmem:[%s2 + $0x20] sm:$0xf]
  %v442 = vld [vmem:[%s2 + $0x24] sm:$0xf]
  %v443 = vld [vmem:[%s2 + $0x28] sm:$0xf]
  %v444 = vld [vmem:[%s2 + $0x2c] sm:$0xf]
  %v445 = vld [vmem:[%s2 + $0x30] sm:$0xf]
  %v446 = vld [vmem:[%s2 + $0x34] sm:$0xf]
  %v447 = vld [vmem:[%s2 + $0x38] sm:$0xf]
  %v448 = vld [vmem:[%s2 + $0x3c] sm:$0xf]
  %v449 = vld [vmem:[#allocation2 + $0x1] sm:$0xff]
  %v450 = vld [vmem:[#allocation2 + $0x9] sm:$0xff]
  %v451 = vld [vmem:[#allocation2 + $0x19] sm:$0xff]
  %v452 = vld [vmem:[#allocation2 + $0x21] sm:$0xff]
  %v453 = vpack.c.bf16 %v450, %v449
  %v454 = vpack.c.bf16 %v452, %v451
  %s455 = scalar_lea.vmem %s2, 64
  %v456 = vld [vmem:[%s455] sm:$0xf]
  %v457 = vld [vmem:[%s455 + $0x4] sm:$0xf]
  %v458 = vld [vmem:[%s455 + $0x8] sm:$0xf]
  %v459 = vld [vmem:[%s455 + $0xc] sm:$0xf]
  %v460 = vld [vmem:[%s455 + $0x10] sm:$0xf]
  %v461 = vld [vmem:[%s455 + $0x14] sm:$0xf]
  %v462 = vld [vmem:[%s455 + $0x18] sm:$0xf]
  %v463 = vld [vmem:[%s455 + $0x1c] sm:$0xf]
  %v464 = vld [vmem:[%s455 + $0x20] sm:$0xf]
  %v465 = vld [vmem:[%s455 + $0x24] sm:$0xf]
  %v466 = vld [vmem:[%s455 + $0x28] sm:$0xf]
  %v467 = vld [vmem:[%s455 + $0x2c] sm:$0xf]
  %v468 = vld [vmem:[%s455 + $0x30] sm:$0xf]
  %v469 = vld [vmem:[%s455 + $0x34] sm:$0xf]
  %v470 = vld [vmem:[%s455 + $0x38] sm:$0xf]
  %v471 = vld [vmem:[%s455 + $0x3c] sm:$0xf]
  %v488 = vunpack.c.l.b16 %v456
  %v489 = vunpack.c.l.b16 %v457
  %v490 = vunpack.c.l.b16 %v458
  %v491 = vunpack.c.l.b16 %v459
  %v492 = vunpack.c.l.b16 %v460
  %v493 = vunpack.c.l.b16 %v461
  %v494 = vunpack.c.l.b16 %v462
  %v495 = vunpack.c.l.b16 %v463
  %v496 = vunpack.c.l.b16 %v464
  %v497 = vunpack.c.l.b16 %v465
  %v498 = vunpack.c.l.b16 %v466
  %v499 = vunpack.c.l.b16 %v467
  %v500 = vunpack.c.l.b16 %v468
  %v501 = vunpack.c.l.b16 %v469
  %v502 = vunpack.c.l.b16 %v470
  %v503 = vunpack.c.l.b16 %v471
  %v504 = vpack.c.b16 %v489, %v488
  %v505 = vpack.c.b16 %v491, %v490
  %v506 = vpack.c.b16 %v493, %v492
  %v507 = vpack.c.b16 %v495, %v494
  %v508 = vpack.c.b16 %v497, %v496
  %v509 = vpack.c.b16 %v499, %v498
  %v510 = vpack.c.b16 %v501, %v500
  %v511 = vpack.c.b16 %v503, %v502
  %520 = vmatpush.bf16.msra.mxu0 %v511
  %521 = vmatpush.bf16.msra.mxu0 %v510
  %522 = vmatpush.bf16.msra.mxu0 %v509
  %523 = vmatpush.bf16.msra.mxu0 %v508
  %524 = vmatpush.bf16.msra.mxu0 %v507
  %525 = vmatpush.bf16.msra.mxu0 %v506
  %526 = vmatpush.bf16.msra.mxu0 %v505
  %527 = vmatpush.bf16.msra.mxu0 %v504
  %528 = vmatmul.bf16.gmra.mxu0 %v453
  %v529 = vpop.f32.mrf.mxu0
  %v530 = vadd.f32 0.0, %v529
  %v531 = vpop.f32.mrf.mxu0
  %v532 = vadd.f32 0.0, %v531
  %533 = vmatmul.bf16.gmra.mxu0 %v454
  %v534 = vpop.f32.mrf.mxu0
  %v535 = vadd.f32 0.0, %v534
  %v536 = vpop.f32.mrf.mxu0
  %v537 = vadd.f32 0.0, %v536
  %538 = vdwg.mxu0
  %v555 = vunpack.c.l.b16 %v433
  %v556 = vunpack.c.l.b16 %v434
  %v557 = vunpack.c.l.b16 %v435
  %v558 = vunpack.c.l.b16 %v436
  %v559 = vunpack.c.l.b16 %v437
  %v560 = vunpack.c.l.b16 %v438
  %v561 = vunpack.c.l.b16 %v439
  %v562 = vunpack.c.l.b16 %v440
  %v563 = vunpack.c.l.b16 %v441
  %v564 = vunpack.c.l.b16 %v442
  %v565 = vunpack.c.l.b16 %v443
  %v566 = vunpack.c.l.b16 %v444
  %v567 = vunpack.c.l.b16 %v445
  %v568 = vunpack.c.l.b16 %v446
  %v569 = vunpack.c.l.b16 %v447
  %v570 = vunpack.c.l.b16 %v448
  %v571 = vpack.c.b16 %v556, %v555
  %v572 = vpack.c.b16 %v558, %v557
  %v573 = vpack.c.b16 %v560, %v559
  %v574 = vpack.c.b16 %v562, %v561
  %v575 = vpack.c.b16 %v564, %v563
  %v576 = vpack.c.b16 %v566, %v565
  %v577 = vpack.c.b16 %v568, %v567
  %v578 = vpack.c.b16 %v570, %v569
  %587 = vmatpush.bf16.msra.mxu0 %v578
  %588 = vmatpush.bf16.msra.mxu0 %v577
  %589 = vmatpush.bf16.msra.mxu0 %v576
  %590 = vmatpush.bf16.msra.mxu0 %v575
  %591 = vmatpush.bf16.msra.mxu0 %v574
  %592 = vmatpush.bf16.msra.mxu0 %v573
  %593 = vmatpush.bf16.msra.mxu0 %v572
  %594 = vmatpush.bf16.msra.mxu0 %v571
  %595 = vmatmul.bf16.gmra.mxu0 %v431
  %v596 = vpop.f32.mrf.mxu0
  %v597 = vadd.f32 %v530, %v596
  %v598 = vpop.f32.mrf.mxu0
  %v599 = vadd.f32 %v532, %v598
  %600 = vmatmul.bf16.gmra.mxu0 %v432
  %v601 = vpop.f32.mrf.mxu0
  %v602 = vadd.f32 %v535, %v601
  %v603 = vpop.f32.mrf.mxu0
  %v604 = vadd.f32 %v537, %v603
  %605 = vdwg.mxu0
  %v606 = vld [vmem:[#allocation2 + $0x2] sm:$0xff]
  %v607 = vld [vmem:[#allocation2 + $0xa] sm:$0xff]
  %v608 = vld [vmem:[#allocation2 + $0x1a] sm:$0xff]
  %v609 = vld [vmem:[#allocation2 + $0x22] sm:$0xff]
  %v610 = vpack.c.bf16 %v607, %v606
  %v611 = vpack.c.bf16 %v609, %v608
  %s612 = scalar_lea.vmem %s2, 128
  %v613 = vld [vmem:[%s612] sm:$0xf]
  %v614 = vld [vmem:[%s612 + $0x4] sm:$0xf]
  %v615 = vld [vmem:[%s612 + $0x8] sm:$0xf]
  %v616 = vld [vmem:[%s612 + $0xc] sm:$0xf]
  %v617 = vld [vmem:[%s612 + $0x10] sm:$0xf]
  %v618 = vld [vmem:[%s612 + $0x14] sm:$0xf]
  %v619 = vld [vmem:[%s612 + $0x18] sm:$0xf]
  %v620 = vld [vmem:[%s612 + $0x1c] sm:$0xf]
  %v621 = vld [vmem:[%s612 + $0x20] sm:$0xf]
  %v622 = vld [vmem:[%s612 + $0x24] sm:$0xf]
  %v623 = vld [vmem:[%s612 + $0x28] sm:$0xf]
  %v624 = vld [vmem:[%s612 + $0x2c] sm:$0xf]
  %v625 = vld [vmem:[%s612 + $0x30] sm:$0xf]
  %v626 = vld [vmem:[%s612 + $0x34] sm:$0xf]
  %v627 = vld [vmem:[%s612 + $0x38] sm:$0xf]
  %v628 = vld [vmem:[%s612 + $0x3c] sm:$0xf]
  %v645 = vunpack.c.l.b16 %v613
  %v646 = vunpack.c.l.b16 %v614
  %v647 = vunpack.c.l.b16 %v615
  %v648 = vunpack.c.l.b16 %v616
  %v649 = vunpack.c.l.b16 %v617
  %v650 = vunpack.c.l.b16 %v618
  %v651 = vunpack.c.l.b16 %v619
  %v652 = vunpack.c.l.b16 %v620
  %v653 = vunpack.c.l.b16 %v621
  %v654 = vunpack.c.l.b16 %v622
  %v655 = vunpack.c.l.b16 %v623
  %v656 = vunpack.c.l.b16 %v624
  %v657 = vunpack.c.l.b16 %v625
  %v658 = vunpack.c.l.b16 %v626
  %v659 = vunpack.c.l.b16 %v627
  %v660 = vunpack.c.l.b16 %v628
  %v661 = vpack.c.b16 %v646, %v645
  %v662 = vpack.c.b16 %v648, %v647
  %v663 = vpack.c.b16 %v650, %v649
  %v664 = vpack.c.b16 %v652, %v651
  %v665 = vpack.c.b16 %v654, %v653
  %v666 = vpack.c.b16 %v656, %v655
  %v667 = vpack.c.b16 %v658, %v657
  %v668 = vpack.c.b16 %v660, %v659
  %677 = vmatpush.bf16.msra.mxu0 %v668
  %678 = vmatpush.bf16.msra.mxu0 %v667
  %679 = vmatpush.bf16.msra.mxu0 %v666
  %680 = vmatpush.bf16.msra.mxu0 %v665
  %681 = vmatpush.bf16.msra.mxu0 %v664
  %682 = vmatpush.bf16.msra.mxu0 %v663
  %683 = vmatpush.bf16.msra.mxu0 %v662
  %684 = vmatpush.bf16.msra.mxu0 %v661
  %685 = vmatmul.bf16.gmra.mxu0 %v610
  %v686 = vpop.f32.mrf.mxu0
  %v687 = vadd.f32 0.0, %v686
  %v688 = vpop.f32.mrf.mxu0
  %v689 = vadd.f32 0.0, %v688
  %690 = vmatmul.bf16.gmra.mxu0 %v611
  %v691 = vpop.f32.mrf.mxu0
  %v692 = vadd.f32 0.0, %v691
  %v693 = vpop.f32.mrf.mxu0
  %v694 = vadd.f32 0.0, %v693
  %695 = vdwg.mxu0
  %v696 = vadd.f32 %v597, %v687
  %v697 = vadd.f32 %v599, %v689
  %v698 = vadd.f32 %v602, %v692
  %v699 = vadd.f32 %v604, %v694
  %v700 = vadd.f32 %v696, %v697
  %v701 = vadd.f32 %v700, %v698
  %v702 = vadd.f32 %v701, %v699
  %v703 = vrot.slane %v702, 4
  %v704 = vadd.f32 %v702, %v703
  %v705 = vrot.slane %v704, 2
  %v706 = vadd.f32 %v704, %v705
  %v707 = vrot.slane %v706, 1
  %v708 = vadd.f32 %v706, %v707
  %v709 = vmul.f32 %v696, %v696
  %v710 = vmul.f32 %v697, %v697
  %v711 = vmul.f32 %v698, %v698
  %v712 = vmul.f32 %v699, %v699
  %v713 = vadd.f32 %v709, %v710
  %v714 = vadd.f32 %v713, %v711
  %v715 = vadd.f32 %v714, %v712
  %v716 = vrot.slane %v715, 4
  %v717 = vadd.f32 %v715, %v716
  %v718 = vrot.slane %v717, 2
  %v719 = vadd.f32 %v717, %v718
  %v720 = vrot.slane %v719, 1
  %v721 = vadd.f32 %v719, %v720
  %v722 = vld [vmem:[%s7] sm:$0xff]
  %v723 = vld [vmem:[%s7 + $0x8] sm:$0xff]
  %v724 = vld [vmem:[%s7 + $0x10] sm:$0xff]
  %v725 = vld [vmem:[%s7 + $0x18] sm:$0xff]
  %v726 = vld [vmem:[%s7 + $0x20] sm:$0xff]
  %v727 = vld [vmem:[%s7 + $0x28] sm:$0xff]
  %v728 = vld [vmem:[%s7 + $0x30] sm:$0xff]
  %v729 = vld [vmem:[%s7 + $0x38] sm:$0xff]
  %v730 = vld [vmem:[%s7 + $0x40] sm:$0xff]
  %v731 = vld [vmem:[%s7 + $0x48] sm:$0xff]
  %v732 = vld [vmem:[%s7 + $0x50] sm:$0xff]
  %v733 = vld [vmem:[%s7 + $0x58] sm:$0xff]
  %v734 = vld [vmem:[%s7 + $0x60] sm:$0xff]
  %v735 = vld [vmem:[%s7 + $0x68] sm:$0xff]
  %v736 = vld [vmem:[%s7 + $0x70] sm:$0xff]
  %v737 = vld [vmem:[%s7 + $0x78] sm:$0xff]
  %738 = vmatpush.msra.mxu0 %v737
  %739 = vmatpush.msra.mxu0 %v736
  %740 = vmatpush.msra.mxu0 %v735
  %741 = vmatpush.msra.mxu0 %v734
  %742 = vmatpush.msra.mxu0 %v733
  %743 = vmatpush.msra.mxu0 %v732
  %744 = vmatpush.msra.mxu0 %v731
  %745 = vmatpush.msra.mxu0 %v730
  %746 = vmatpush.msra.mxu0 %v729
  %747 = vmatpush.msra.mxu0 %v728
  %748 = vmatpush.msra.mxu0 %v727
  %749 = vmatpush.msra.mxu0 %v726
  %750 = vmatpush.msra.mxu0 %v725
  %751 = vmatpush.msra.mxu0 %v724
  %752 = vmatpush.msra.mxu0 %v723
  %753 = vmatpush.msra.mxu0 %v722
  %754 = vmatmul.f32.gmra.mxu0 %v708
  %v755 = vpop.f32.mrf.mxu0
  %v756 = vadd.f32 0.0, %v755
  %757 = vdwg.mxu0
  %758 = vmatpush.msra.mxu0 %v737
  %759 = vmatpush.msra.mxu0 %v736
  %760 = vmatpush.msra.mxu0 %v735
  %761 = vmatpush.msra.mxu0 %v734
  %762 = vmatpush.msra.mxu0 %v733
  %763 = vmatpush.msra.mxu0 %v732
  %764 = vmatpush.msra.mxu0 %v731
  %765 = vmatpush.msra.mxu0 %v730
  %766 = vmatpush.msra.mxu0 %v729
  %767 = vmatpush.msra.mxu0 %v728
  %768 = vmatpush.msra.mxu0 %v727
  %769 = vmatpush.msra.mxu0 %v726
  %770 = vmatpush.msra.mxu0 %v725
  %771 = vmatpush.msra.mxu0 %v724
  %772 = vmatpush.msra.mxu0 %v723
  %773 = vmatpush.msra.mxu0 %v722
  %774 = vmatmul.f32.gmra.mxu0 %v721
  %v775 = vpop.f32.mrf.mxu0
  %v776 = vadd.f32 0.0, %v775
  %777 = vdwg.mxu0
  %v778 = vmul.f32 %v756, 0.001953125
  %v779 = vmul.f32 %v776, 0.001953125
  %v780 = vmul.f32 %v778, %v778
  %v781 = vsub.f32 %v779, %v780
  %v782 = vmax.f32 %v781, 0.0
  %v783 = vld [vmem:[%s5] sm:$0x1]
  %v784 = vadd.f32 %v782, 1e-05
  %v785 = vrsqrt.pop %v784
  %v786 = vmul.f32 %v785, %v784
  %v787 = vmul.f32 %v786, %v785
  %v788 = vmul.f32 0.5, %v787
  %v789 = vsub.f32 1.5, %v788
  %v790 = vmul.f32 %v785, %v789
  %vm791 = vweird.f32 %v784
  %vm792 = vweird.f32 %v785
  %vm793 = vmor %vm791, %vm792
  %v794 = vsel %vm793, %v785, %v790
  %v795 = vmul.f32 %v783, %v794
  %v796 = vld [vmem:[%s6] sm:$0x1]
  %v797 = vmul.f32 %v778, %v795
  %v798 = vsub.f32 %v796, %v797
  %v799 = vld [vmem:[%s0 + $0x1] sm:$0xff]
  %v800 = vld [vmem:[%s0 + $0x9] sm:$0xff]
  %v801 = vld [vmem:[%s0 + $0x19] sm:$0xff]
  %v802 = vld [vmem:[%s0 + $0x21] sm:$0xff]
  %v804 = vperm.slane %v795, 0
  %v806 = vmul.f32 %v696, %v804
  %v807 = vmul.f32 %v697, %v804
  %v808 = vmul.f32 %v698, %v804
  %v809 = vmul.f32 %v699, %v804
  %v811 = vperm.slane %v798, 0
  %v813 = vadd.f32 %v806, %v811
  %v814 = vadd.f32 %v807, %v811
  %v815 = vadd.f32 %v808, %v811
  %v816 = vadd.f32 %v809, %v811
  %v817 = vadd.f32 %v813, %v799
  %v818 = vadd.f32 %v814, %v800
  %v819 = vadd.f32 %v815, %v801
  %v820 = vadd.f32 %v816, %v802
  %v821 = vmax.f32 %v817, 0.0
  %v822 = vmax.f32 %v818, 0.0
  %v823 = vmax.f32 %v819, 0.0
  %v824 = vmax.f32 %v820, 0.0
  %825 = vst [vmem:[%s8] sm:$0xff] %v821
  %826 = vst [vmem:[%s8 + $0x8] sm:$0xff] %v822
  %827 = vst [vmem:[%s8 + $0x10] sm:$0xff] %v823
  %828 = vst [vmem:[%s8 + $0x18] sm:$0xff] %v824
  // Predicated region
  $region34: #{basic_block_forward.1} parent=0 // pred_check
    _
  $region35: #{basic_block_forward.1} parent=0 // pred_check_branch
    %830 = sbr.rel (0) target = $region37
  $region36: #{basic_block_forward.1} parent=0 // pred_region
    _
  $region37: #{basic_block_forward.1} parent=0 // pred_fallthru
    _
  // Predicated region
  $region38: #{basic_block_forward.1} parent=0 // pred_check
    _
  $region39: #{basic_block_forward.1} parent=0 // pred_check_branch
    %832 = sbr.rel (0) target = $region41
  $region40: #{basic_block_forward.1} parent=0 // pred_region
    _
  $region41: #{basic_block_forward.1} parent=0 // pred_fallthru
    _

</llo_original>
